<compile_context>
chip_gen: v5e
topology: v5e:2x2
jax: 0.10.0
libtpu: 0.0.40
codegen_flags: <defaults>
</compile_context>

<pallas_src>
import jax
import jax.numpy as jnp
from jax.experimental import pallas as pl
from jax.experimental.pallas import tpu as pltpu

N_SPATIAL_DIMS = 2  # (H, W)

_TARGET_BLOCK_BYTES = 2 * 1024 * 1024   # ~2 MiB per pipelined block
_HARD_BLOCK_BYTES = 6 * 1024 * 1024     # never exceed; 2 in + 2 out bufs < ~24 MiB
_VMEM_LIMIT_BYTES = 32 * 1024 * 1024    # explicit scoped-VMEM limit (< v7x 64 MiB)


def _pick_lane_tile(length, row_bytes, target_bytes=_TARGET_BLOCK_BYTES):
    """Largest multiple-of-128 divisor T of `length` with row_bytes*T <= target.

    Returns None when `length` is not a multiple of 128 (caller falls back to a
    full-dim block if it fits the hard byte cap, otherwise pads)."""
    if length % 128 != 0:
        return None
    max_cols = max(128, (target_bytes // max(row_bytes, 1)) // 128 * 128)
    best = 128
    t = 256
    while t <= length and t <= max_cols:
        if length % t == 0:
            best = t
        t += 128
    return best


# ---------------------------------------------------------------------------
# Path A kernel: sublane-packed streaming add (embedding precomputed once).
# ---------------------------------------------------------------------------
def _add_embed_kernel(emb_ref, x_ref, o_ref):
    # emb_ref: (1, T)  precomputed CHW-flattened positional embedding slice
    # x_ref  : (Bb, T) inputs  (lane-dense; sublanes = batch rows)
    # o_ref  : (Bb, T) outputs (aliased with x in HBM)
    o_ref[...] = x_ref[...] + emb_ref[...]      # VPU add, broadcast over rows


# ---------------------------------------------------------------------------
# Path B kernel: in-kernel projection (nsd VPU FMAs), emb cached in VMEM.
# ---------------------------------------------------------------------------
def _proj_add_kernel(pos_ref, x_ref, w_ref, b_ref, o_ref, emb_ref):
    # pos_ref: (nsd, T) positions tile (resident across the batch axis)
    # x_ref  : (1, C, T) inputs in native (B, C, HW) layout
    # w_ref  : (C, nsd)  effective weight (W1 - W2)^T            (resident)
    # b_ref  : (C, 1)    effective bias   (sum(W2, 0) + b)       (resident)
    # emb_ref: (C, T)    VMEM scratch caching this tile's projection
    @pl.when(pl.program_id(1) == 0)   # first batch step of this spatial tile
    def _():
        p = pos_ref[...].astype(jnp.float32)             # (nsd, T)
        w = w_ref[...].astype(jnp.float32)               # (C, nsd)
        emb = w[:, 0:1] * p[0:1, :]                      # nsd VPU broadcast-FMAs
        for k in range(1, p.shape[0]):                   # never the MXU (K=2)
            emb = emb + w[:, k:k + 1] * p[k:k + 1, :]
        emb = emb + b_ref[...].astype(jnp.float32)       # (C, 1) broadcast
        emb_ref[...] = emb.astype(emb_ref.dtype)

    o_ref[0] = x_ref[0] + emb_ref[...]


# ---------------------------------------------------------------------------
# Path A wrapper
# ---------------------------------------------------------------------------
def _packed_add(x_nchw, emb_chw):
    B, C, H, W = x_nchw.shape
    L = C * H * W
    dtype = x_nchw.dtype
    itemsize = dtype.itemsize

    x = x_nchw.reshape(B, L)        # free reshape; lane dim = C*H*W (lane-dense)
    emb = emb_chw.reshape(1, L)

    # sublane rows: full batch when small; else a multiple-of-8 block of batch,
    # grown while a full row still fits the byte budget (small-image case).
    if B <= 8 or B % 8 != 0:
        Bb = B
    else:
        Bb = 8
        while (Bb * 2 <= B and B % (Bb * 2) == 0
               and (Bb * 2) * L * itemsize <= _TARGET_BLOCK_BYTES):
            Bb *= 2

    T = _pick_lane_tile(L, Bb * itemsize)
    pad = 0
    if T is None:
        if Bb * L * itemsize <= _HARD_BLOCK_BYTES:
            T = L                                    # full-dim block (legal, bounded)
        else:
            pad = (-L) % 128                         # pad + slice instead of a
            x = jnp.pad(x, ((0, 0), (0, pad)))       # VMEM-busting block
            emb = jnp.pad(emb, ((0, 0), (0, pad)))
            T = _pick_lane_tile(L + pad, Bb * itemsize)
    Lp = L + pad
    grid = (Lp // T, B // Bb)        # tile axis OUTER, batch INNER -> emb resident

    out = pl.pallas_call(
        _add_embed_kernel,
        out_shape=jax.ShapeDtypeStruct((B, Lp), dtype),
        grid=grid,
        in_specs=[
            pl.BlockSpec((1, T), lambda t, b: (0, t)),    # emb (constant over batch)
            pl.BlockSpec((Bb, T), lambda t, b: (b, t)),   # x
        ],
        out_specs=pl.BlockSpec((Bb, T), lambda t, b: (b, t)),
        input_output_aliases={1: 0},                      # in-place add (x -> out)
        compiler_params=pltpu.CompilerParams(
            dimension_semantics=("parallel", "parallel"),
            vmem_limit_bytes=_VMEM_LIMIT_BYTES),
    )(emb, x)

    if pad:
        out = out[:, :L]
    return out.reshape(B, C, H, W)


# ---------------------------------------------------------------------------
# Path B wrapper
# ---------------------------------------------------------------------------
def _chw_proj_add(x_nchw, pos_t, w_eff, b_eff):
    B, C, H, W = x_nchw.shape
    HW = H * W
    dtype = x_nchw.dtype
    nsd = pos_t.shape[0]

    x = x_nchw.reshape(B, C, HW)     # free reshape, no transposes
    T = _pick_lane_tile(HW, C * dtype.itemsize)
    if T is None:
        T = HW                       # dispatcher guarantees this fits the hard cap
    grid = (HW // T, B)              # tile OUTER, batch INNER (emb cache valid)

    out = pl.pallas_call(
        _proj_add_kernel,
        out_shape=jax.ShapeDtypeStruct((B, C, HW), dtype),
        grid=grid,
        in_specs=[
            pl.BlockSpec((nsd, T), lambda t, b: (0, t)),       # positions
            pl.BlockSpec((1, C, T), lambda t, b: (b, 0, t)),   # inputs
            pl.BlockSpec((C, nsd), lambda t, b: (0, 0)),       # W_eff (resident)
            pl.BlockSpec((C, 1), lambda t, b: (0, 0)),         # b_eff (resident)
        ],
        out_specs=pl.BlockSpec((1, C, T), lambda t, b: (b, 0, t)),
        scratch_shapes=[pltpu.VMEM((C, T), dtype)],
        input_output_aliases={1: 0},                           # in-place add
        # Batch axis is "arbitrary": the emb scratch is (re)filled only when
        # program_id(1)==0, so megacore may only shard the spatial-tile axis.
        compiler_params=pltpu.CompilerParams(
            dimension_semantics=("parallel", "arbitrary"),
            vmem_limit_bytes=_VMEM_LIMIT_BYTES),
    )(pos_t, x, w_eff, b_eff)

    return out.reshape(B, C, H, W)


# ---------------------------------------------------------------------------
# Public entry point
# ---------------------------------------------------------------------------
def soft_position_embed(inputs_nchw, positions_hwn, weight_t, bias):
    """SoftPositionEmbed forward (savi_style=False, cnn_channel_order=True).

    inputs_nchw:   (B, C, H, W)
    positions_hwn: (H, W, n_spatial_dims), values in [0, 1] (fixed spatial grid)
    weight_t:      (2 * n_spatial_dims, C)  == nn.Linear.weight.T
    bias:          (C,)
    """
    # TODO(synk): savi_style=True ((p-0.5)*2 with an nsd-wide Linear) and
    #             cnn_channel_order=False (channels-last add) are not implemented.
    # TODO(synk): per-batch-varying position grids are not supported.
    B, C, H, W = inputs_nchw.shape
    nsd = positions_hwn.shape[-1]
    HW = H * W
    itemsize = inputs_nchw.dtype.itemsize

    # Fold cat([p, 1-p]) @ W^T + b  ==  p @ (W1 - W2) + (sum(W2) + b).
    # Always folded in f32 (avoids compounding rounding for bf16 params).
    w32 = weight_t.astype(jnp.float32)
    b32 = bias.astype(jnp.float32)
    w1, w2 = w32[:nsd], w32[nsd:]
    w_eff = jnp.transpose(w1 - w2)                                # (C, nsd)
    b_eff = (jnp.sum(w2, axis=0) + b32).reshape(C, 1)             # (C, 1)
    pos_t = positions_hwn.reshape(HW, nsd).astype(jnp.float32).T  # (nsd, HW)

    small_c = (C < 8) or (C % 8 != 0)
    oversize_full_block = (HW % 128 != 0) and (C * HW * itemsize > _HARD_BLOCK_BYTES)
    if small_c or oversize_full_block:
        # Path A: precompute the (C, HW) embedding once (tiny: HW*C elements),
        # then a sublane-packed streaming add over (B, C*HW).
        emb = (w_eff @ pos_t + b_eff).astype(inputs_nchw.dtype)   # (C, HW)
        return _packed_add(inputs_nchw, emb)
    # Path B: projection stays in-kernel as VPU FMAs, emb cached per tile.
    return _chw_proj_add(inputs_nchw, pos_t, w_eff, b_eff)


if __name__ == "__main__":
    nsd = N_SPATIAL_DIMS
    key = jax.random.PRNGKey(0)
    k_x, k_w, k_b, k_x2, k_w2, k_b2 = jax.random.split(key, 6)

    def make_positions(H, W):
        hh = (jnp.arange(H, dtype=jnp.float32) / (H - 1))[:, None]
        ww = (jnp.arange(W, dtype=jnp.float32) / (W - 1))[None, :]
        return jnp.stack([jnp.broadcast_to(hh, (H, W)),
                          jnp.broadcast_to(ww, (H, W))], axis=-1)   # (H, W, 2)

    def reference(x, positions, weight_t, bias):
        pos_cat = jnp.concatenate([positions, 1.0 - positions], axis=-1)  # (H,W,2nsd)
        emb = pos_cat @ weight_t + bias                                   # (H,W,C)
        emb = jnp.transpose(emb, (2, 0, 1))                               # (C,H,W)
        return x + emb[None]

    # Case 1: small C (C=4) -> sublane-packed streaming-add path.
    B, C, H, W = 2, 4, 16, 16
    weight_t = jax.random.normal(k_w, (2 * nsd, C), dtype=jnp.float32) * 0.1
    bias = jax.random.normal(k_b, (C,), dtype=jnp.float32) * 0.1
    x = jax.random.normal(k_x, (B, C, H, W), dtype=jnp.float32)
    positions = make_positions(H, W)

    out = jax.block_until_ready(soft_position_embed(x, positions, weight_t, bias))
    ref = reference(x, positions, weight_t, bias)
    assert out.shape == (B, C, H, W) and out.dtype == x.dtype
    assert jnp.allclose(out, ref, atol=1e-5, rtol=1e-5)

    # Case 2: C multiple of 8 (C=16) -> in-kernel projection path (VMEM emb cache).
    C2 = 16
    weight_t2 = jax.random.normal(k_w2, (2 * nsd, C2), dtype=jnp.float32) * 0.1
    bias2 = jax.random.normal(k_b2, (C2,), dtype=jnp.float32) * 0.1
    x2 = jax.random.normal(k_x2, (B, C2, H, W), dtype=jnp.float32)

    out2 = jax.block_until_ready(soft_position_embed(x2, positions, weight_t2, bias2))
    ref2 = reference(x2, positions, weight_t2, bias2)
    assert out2.shape == (B, C2, H, W) and out2.dtype == x2.dtype
    assert jnp.allclose(out2, ref2, atol=1e-5, rtol=1e-5)

    print("KERNEL_OK")
</pallas_src>

<mosaic_0001>
module attributes {stable_mosaic.version = 11 : i64} {
  func.func @_add_embed_kernel(%arg0: i32, %arg1: i32, %arg2: memref<1x1024xf32, #tpu.memory_space<vmem>>, %arg3: memref<2x1024xf32, #tpu.memory_space<vmem>>, %arg4: memref<2x1024xf32, #tpu.memory_space<vmem>>) attributes {dimension_semantics = [#tpu.dimension_semantics<parallel>, #tpu.dimension_semantics<parallel>], iteration_bounds = array<i64: 1, 1>, scalar_prefetch = 0 : i64, scratch_operands = 0 : i64, tpu.core_type = #tpu.core_type<tc>, window_params = [{transform_indices = @transform_0, window_bounds = array<i64: 1, 1024>}, {transform_indices = @transform_1, window_bounds = array<i64: 2, 1024>}, {transform_indices = @transform_2, window_bounds = array<i64: 2, 1024>}]} {
    %c0 = arith.constant 0 : index
    %c0_0 = arith.constant 0 : index
    %0 = vector.load %arg3[%c0, %c0_0] : memref<2x1024xf32, #tpu.memory_space<vmem>>, vector<2x1024xf32>
    %c0_1 = arith.constant 0 : index
    %c0_2 = arith.constant 0 : index
    %1 = vector.load %arg2[%c0_1, %c0_2] : memref<1x1024xf32, #tpu.memory_space<vmem>>, vector<1x1024xf32>
    %2 = vector.broadcast %1 : vector<1x1024xf32> to vector<2x1024xf32>
    %3 = arith.addf %0, %2 : vector<2x1024xf32>
    %c0_3 = arith.constant 0 : index
    %c0_4 = arith.constant 0 : index
    %4 = vector.load %arg4[%c0_3, %c0_4] : memref<2x1024xf32, #tpu.memory_space<vmem>>, vector<2x1024xf32>
    tpu.vector_store %arg4[%c0_3, %c0_4], %3 {strides = array<i32>} : memref<2x1024xf32, #tpu.memory_space<vmem>>, vector<2x1024xf32>,
    return
  }
  func.func @transform_0(%arg0: i32, %arg1: i32) -> (i32, i32) {
    %c0_i32 = arith.constant 0 : i32
    %c0_i32_0 = arith.constant 0 : i32
    return %c0_i32, %arg0 : i32, i32
  }
  func.func @transform_1(%arg0: i32, %arg1: i32) -> (i32, i32) {
    %c0_i32 = arith.constant 0 : i32
    return %arg1, %arg0 : i32, i32
  }
  func.func @transform_2(%arg0: i32, %arg1: i32) -> (i32, i32) {
    %c0_i32 = arith.constant 0 : i32
    return %arg1, %arg0 : i32, i32
  }
}

</mosaic_0001>

<llo_original>
// kernel: tpu_custom_call.1
$region0: #{tpu_custom_call.1}
  #allocation0 [shape = 'u32[]', space=smem, size = 0x4, offset = 0x4, fixed_abs, tag = 'smem constant byte address 0x4 - core index']
  #allocation1 [shape = 'u32[72,128]{1,0:T(1,128)}', space=vmem, size = 0x9000, scoped, tag = 'internal scratch']
  %s0 = inlined_call_operand.vmem [shape: f32[1,1024], index: 0, kind: input, shape index: {}]
  %s1 = inlined_call_operand.hbm [shape: f32[2,1024], index: 1, kind: input, shape index: {}, may-alias: {1,2}]
  %s2 = inlined_call_operand.hbm [shape: f32[2,1024], index: 2, kind: output, shape index: {}, may-alias: {1,2}]
  %s3 = sld [smem:[#allocation0]]
  $region22: #{tpu_custom_call.1} parent=0
    _
  %s5 = ssub.s32 1, %s3
  %s6 = scalar_select 0, %s5, %s3
  $region1: #{tpu_custom_call.1} parent=0
    #allocation2 [shape = 'u8[8192]{0}', space=vmem, size = 0x2000, scoped, tag = 'input window, operand 1, single buffered']
    #allocation3 [shape = 's32[1]{0}', space=sflag, size = 0x4, scoped, tag = 'scoped memory for tpu_custom_call.1']
    #allocation4 [shape = 's32[1]{0}', space=sflag, size = 0x4, scoped, tag = 'scoped memory for tpu_custom_call.1']
    #allocation5 [shape = 'u8[8192]{0}', space=vmem, size = 0x2000, scoped, tag = 'output window, operand 0, single buffered']
    %7 = vsyncpa [#allocation3], 0
    %8 = vsyncpa [#allocation4], 0
    // Predicated region
    $region2: #{tpu_custom_call.1} parent=1 // pred_check
      _
    $region3: #{tpu_custom_call.1} parent=1 // pred_check_branch
      %10 = sbr.rel (0) target = $region5
    $region4: #{tpu_custom_call.1} parent=1 // pred_region
      _
    $region5: #{tpu_custom_call.1} parent=1 // pred_fallthru
      _
    // Predicated region
    $region6: #{tpu_custom_call.1} parent=1 // pred_check
      _
    $region7: #{tpu_custom_call.1} parent=1 // pred_check_branch
      %12 = sbr.rel (0) target = $region9
    $region8: #{tpu_custom_call.1} parent=1 // pred_region
      %14 = vsyncadd [#allocation3], 0
      %s16 = sshll.u32 %s1, 4
      %s17 = int_to_ptr.hbm [resolvable:$true] %s16
      %s18 = sshll.u32 [#allocation2], 4
      %s19 = int_to_ptr.vmem [resolvable:$true] %s18
      %21 = dma.hbm_to_vmem [thread:$0]  %s17, 256, %s19, [#allocation3]
    $region9: #{tpu_custom_call.1} parent=1 // pred_fallthru
      _
    // Predicated region
    $region10: #{tpu_custom_call.1} parent=1 // pred_check
      _
    $region11: #{tpu_custom_call.1} parent=1 // pred_check_branch
      %23 = sbr.rel (0) target = $region13
    $region12: #{tpu_custom_call.1} parent=1 // pred_region
      %25 = dma.done [#allocation3], 256
    $region13: #{tpu_custom_call.1} parent=1 // pred_fallthru
      _
    %v26 = vld [vmem:[#allocation2] sm:$0xff]
    %v27 = vld [vmem:[#allocation2 + $0x8] sm:$0xff]
    %v28 = vld [vmem:[%s0] sm:$0xff]
    %v30 = vperm.slane %v28, 0
    %v31 = vperm.slane %v28, 1
    %v32 = vperm.slane %v28, 2
    %v33 = vperm.slane %v28, 3
    %v34 = vperm.slane %v28, 4
    %v35 = vperm.slane %v28, 5
    %v36 = vperm.slane %v28, 6
    %v37 = vperm.slane %v28, 7
    %v38 = vrot.slane %v31, 6
    %v39 = vrot.slane %v32, 4
    %v40 = vrot.slane %v33, 2
    %v41 = vrot.slane %v35, 6
    %v42 = vrot.slane %v36, 4
    %v43 = vrot.slane %v37, 2
    %vm44 = vcmask 1041408
    %v45 = vsel %vm44, %v30, %v38
    %vm46 = vcmask 1045508
    %v47 = vsel %vm46, %v39, %v40
    %vm48 = vcmask 1043456
    %v49 = vsel %vm48, %v45, %v47
    %v50 = vsel %vm44, %v34, %v41
    %v51 = vsel %vm46, %v42, %v43
    %v52 = vsel %vm48, %v50, %v51
    %v55 = vadd.f32 %v26, %v49
    %v56 = vadd.f32 %v27, %v52
    %57 = vst [vmem:[#allocation5] sm:$0xff] %v55
    %58 = vst [vmem:[#allocation5 + $0x8] sm:$0xff] %v56
    // Predicated region
    $region14: #{tpu_custom_call.1} parent=1 // pred_check
      _
    $region15: #{tpu_custom_call.1} parent=1 // pred_check_branch
      %60 = sbr.rel (0) target = $region17
    $region16: #{tpu_custom_call.1} parent=1 // pred_region
      %62 = vsyncadd [#allocation4], 0
      %s64 = sshll.u32 [#allocation5], 4
      %s65 = int_to_ptr.vmem [resolvable:$true] %s64
      %s66 = sshll.u32 %s2, 4
      %s67 = int_to_ptr.hbm [resolvable:$true] %s66
      %69 = dma.vmem_to_hbm [thread:$0]  %s65, 256, %s67, [#allocation4]
    $region17: #{tpu_custom_call.1} parent=1 // pred_fallthru
      _
    // Predicated region
    $region18: #{tpu_custom_call.1} parent=1 // pred_check
      _
    $region19: #{tpu_custom_call.1} parent=1 // pred_check_branch
      %71 = sbr.rel (0) target = $region21
    $region20: #{tpu_custom_call.1} parent=1 // pred_region
      %73 = dma.done [#allocation4], 256
    $region21: #{tpu_custom_call.1} parent=1 // pred_fallthru
      _
    %74 = vsyncpa [#allocation3], 1
    %75 = vsyncpa [#allocation4], 1

</llo_original>
